<compile_context>
chip_gen: v7x
topology: tpu7x:2x2x1
jax: 0.10.0
libtpu: 0.0.40
codegen_flags: <defaults>
</compile_context>

<pallas_src>
import functools

import jax
import jax.numpy as jnp
from jax.experimental import pallas as pl
from jax.experimental.pallas import tpu as pltpu

LANE = 128  # TPU vreg lane width; all feature dims are padded to a multiple.


def _round_up(v, m):
    return (v + m - 1) // m * m


def _pad2d(a, rows, cols):
    r, c = a.shape
    if r == rows and c == cols:
        return a
    return jnp.pad(a, ((0, rows - r), (0, cols - c)))


def _pick_tiles(n):
    # Row tile tm: largest of (1024, 512, 256, 128) whose node-padding overhead
    # stays <= ~50% (a generously padded 512/1024 tile still beats 128 tiles:
    # ~85-86% vs ~29% of HBM roofline).  tk = tm (both powers of two, so n_pad
    # being a multiple of tm makes it a multiple of tk as well).  Capped at
    # 1024 for the v7x VMEM budget -- 1024 already reaches the roofline knee.
    tm = 128
    for t in (1024, 512, 256, 128):
        if _round_up(n, t) <= (3 * max(n, 128)) // 2:
            tm = t
            break
    return tm, tm


# ----------------------------------------------------------------------------
# Fused GCN layer kernel:  out[i] = sum_k A[i,k] @ (X[k] @ W)  + b  [+ ReLU]
#   grid = (row tiles, reduction tiles); W and b are VMEM-resident.
#   If no scratch is passed, accumulation happens directly in the (f32,
#   revisited) output block.
# ----------------------------------------------------------------------------
def _gcn_layer_kernel(a_ref, x_ref, w_ref, b_ref, o_ref, *scratch, apply_relu):
    acc_ref = scratch[0] if scratch else o_ref
    k = pl.program_id(1)

    @pl.when(k == 0)
    def _():
        acc_ref[...] = jnp.zeros_like(acc_ref)

    # Fused feature transform + aggregation, bf16 x bf16 -> f32 on the MXU.
    xw = jnp.dot(x_ref[...], w_ref[...], preferred_element_type=jnp.float32)
    acc_ref[...] += jnp.dot(a_ref[...], xw.astype(jnp.bfloat16),
                            preferred_element_type=jnp.float32)

    @pl.when(k == pl.num_programs(1) - 1)
    def _():
        out = acc_ref[...] + b_ref[...]          # bias folded into finalize (f32)
        if apply_relu:
            out = jnp.maximum(out, 0.0)
        o_ref[...] = out.astype(o_ref.dtype)


def _gcn_layer(a, x, w, b, *, tm, tk, apply_relu, out_dtype):
    """One GCNConv layer on pre-padded inputs: A_hat @ (X @ W) + b [+ ReLU]."""
    n_pad = a.shape[0]
    f_in_pad = x.shape[1]
    f_out_pad = w.shape[1]

    # f32 outputs accumulate directly in the revisited output block; bf16
    # outputs need a separate f32 accumulator.
    use_acc_scratch = out_dtype != jnp.float32
    scratch_shapes = (
        [pltpu.VMEM((tm, f_out_pad), jnp.float32)] if use_acc_scratch else []
    )

    # Triple-buffer the dominant A_hat stream when the grid is long enough.
    n_steps = (n_pad // tm) * (n_pad // tk)
    a_spec_kwargs = {"pipeline_mode": pl.Buffered(3)} if n_steps >= 3 else {}
    a_spec = pl.BlockSpec((tm, tk), lambda i, k: (i, k), **a_spec_kwargs)

    kernel = functools.partial(_gcn_layer_kernel, apply_relu=apply_relu)
    return pl.pallas_call(
        kernel,
        out_shape=jax.ShapeDtypeStruct((n_pad, f_out_pad), out_dtype),
        grid_spec=pltpu.PrefetchScalarGridSpec(
            num_scalar_prefetch=0,
            grid=(n_pad // tm, n_pad // tk),
            in_specs=[
                a_spec,                                                   # A_hat tile (bf16)
                pl.BlockSpec((tk, f_in_pad), lambda i, k: (k, 0)),        # X k-tile (bf16)
                pl.BlockSpec((f_in_pad, f_out_pad), lambda i, k: (0, 0)),  # W resident (bf16)
                pl.BlockSpec((1, f_out_pad), lambda i, k: (0, 0)),        # bias resident (f32)
            ],
            out_specs=pl.BlockSpec((tm, f_out_pad), lambda i, k: (i, 0)),
            scratch_shapes=scratch_shapes,
        ),
        compiler_params=pltpu.CompilerParams(
            # Row tiles independent -> split across v7x's two TensorCores;
            # reduction axis is the sequential accumulator loop.
            dimension_semantics=("parallel", "arbitrary"),
            # Explicit budget: ~9 MiB working set at tm=tk=1024; 32 MiB is safe
            # on every generation (v5e default scoped is only 16 MiB).
            vmem_limit_bytes=32 * 1024 * 1024,
        ),
    )(a, x, w, b)


# ----------------------------------------------------------------------------
# Glue: dense symmetric normalization (GCNConv semantics with self-loops),
# built directly at the padded size and cast to bf16 in one fused pass.
# ----------------------------------------------------------------------------
# TODO(synk): for realistic graph sizes replace the dense A_hat with a CSR
# scalar-prefetch gather + segment-sum Pallas kernel; dense A @ XW is O(N^2)
# work and HBM traffic for a graph with O(N) edges.
def build_normalized_adj_padded(edge_index, num_nodes, n_pad):
    src = edge_index[0]
    tgt = edge_index[1]
    a = jnp.zeros((n_pad, n_pad), jnp.float32)
    a = a.at[tgt, src].add(1.0)                      # message j -> i sits at A[i, j]
    idx = jnp.arange(num_nodes)
    a = a.at[idx, idx].add(1.0)                      # self-loops on real nodes only
    deg = a.sum(axis=1)                              # padded rows: deg=0 -> row stays 0
    d_inv_sqrt = jax.lax.rsqrt(jnp.maximum(deg, 1e-12))
    # normalize + downcast fuse under jit -> a single O(N^2) wrapper pass.
    return (d_inv_sqrt[:, None] * a * d_inv_sqrt[None, :]).astype(jnp.bfloat16)


# ----------------------------------------------------------------------------
# GCNEncoder forward:  z = conv2( relu(conv1(x, A_hat)), A_hat )
# ----------------------------------------------------------------------------
def gcn_encoder_forward(x, edge_index, params):
    n, f_in = x.shape
    hidden_dim = params["w1"].shape[1]
    emb_dim = params["w2"].shape[1]

    tm, tk = _pick_tiles(n)
    n_pad = _round_up(n, tm)
    f_in_pad = _round_up(f_in, LANE)
    hid_pad = _round_up(hidden_dim, LANE)
    emb_pad = _round_up(emb_dim, LANE)

    a_pad = build_normalized_adj_padded(edge_index, n, n_pad)      # bf16 [n_pad, n_pad]
    x_pad = _pad2d(x, n_pad, f_in_pad).astype(jnp.bfloat16)        # pre-cast: halves X DMA

    w1 = _pad2d(params["w1"], f_in_pad, hid_pad).astype(jnp.bfloat16)
    b1 = _pad2d(params["b1"].reshape(1, -1), 1, hid_pad)           # f32
    w2 = _pad2d(params["w2"], hid_pad, emb_pad).astype(jnp.bfloat16)
    b2 = _pad2d(params["b2"].reshape(1, -1), 1, emb_pad)           # f32

    # NOTE: padded rows of h contain relu(b1) (bias is added to every row of a
    # row tile).  This is benign: the padded *columns* of A_hat are zero, so
    # those rows contribute nothing in layer 2, and the final slice drops the
    # padded rows of z.
    h = _gcn_layer(a_pad, x_pad, w1, b1, tm=tm, tk=tk,
                   apply_relu=True, out_dtype=jnp.bfloat16)
    z = _gcn_layer(a_pad, h, w2, b2, tm=tm, tk=tk,
                   apply_relu=False, out_dtype=jnp.float32)
    return z[:n, :emb_dim]


def init_params(key, input_dim, hidden_dim, embedding_dim):
    # Glorot-uniform weights, zero bias (matches GCNConv reset_parameters).
    k1, k2 = jax.random.split(key)

    def glorot(k, fan_in, fan_out):
        bound = (6.0 / (fan_in + fan_out)) ** 0.5
        return jax.random.uniform(
            k, (fan_in, fan_out), jnp.float32, minval=-bound, maxval=bound
        )

    return {
        "w1": glorot(k1, input_dim, hidden_dim),
        "b1": jnp.zeros((hidden_dim,), jnp.float32),
        "w2": glorot(k2, hidden_dim, embedding_dim),
        "b2": jnp.zeros((embedding_dim,), jnp.float32),
    }


def _reference_forward(x, edge_index, params):
    # Pure-JAX f32 reference of the same GCNEncoder forward (for validation).
    n = x.shape[0]
    src, tgt = edge_index[0], edge_index[1]
    a = jnp.zeros((n, n), jnp.float32).at[tgt, src].add(1.0)
    a = a + jnp.eye(n, dtype=jnp.float32)
    deg = a.sum(axis=1)
    d = jax.lax.rsqrt(jnp.maximum(deg, 1e-12))
    a_hat = d[:, None] * a * d[None, :]
    h = jnp.maximum(a_hat @ (x @ params["w1"]) + params["b1"], 0.0)
    return a_hat @ (h @ params["w2"]) + params["b2"]


if __name__ == "__main__":
    num_nodes = 16
    input_dim = 8
    hidden_dim = 32
    embedding_dim = 16

    key = jax.random.PRNGKey(0)
    kx, kp = jax.random.split(key)

    # Deterministic node features and a bidirectional ring graph.
    x = jax.random.normal(kx, (num_nodes, input_dim), jnp.float32)
    src = jnp.arange(num_nodes, dtype=jnp.int32)
    dst = (src + 1) % num_nodes
    edge_index = jnp.concatenate(
        [jnp.stack([src, dst]), jnp.stack([dst, src])], axis=1
    )  # shape (2, 2*num_nodes)

    params = init_params(kp, input_dim, hidden_dim, embedding_dim)

    fwd = jax.jit(gcn_encoder_forward)
    z = fwd(x, edge_index, params)
    jax.block_until_ready(z)

    assert z.shape == (num_nodes, embedding_dim), z.shape
    assert z.dtype == jnp.float32

    # Loose-tolerance check vs f32 reference (bf16 A_hat / weights / hidden).
    z_ref = _reference_forward(x, edge_index, params)
    assert jnp.allclose(z, z_ref, atol=5e-2, rtol=5e-2), float(
        jnp.max(jnp.abs(z - z_ref))
    )
    print("KERNEL_OK")
</pallas_src>

<mosaic_0001>
module attributes {stable_mosaic.version = 11 : i64} {
  func.func private @main(%arg0: i32) attributes {dimension_semantics = [#tpu.dimension_semantics<core_parallel>], iteration_bounds = array<i64: 2>, tpu.core_type = #tpu.core_type<sc_scalar_subcore>, window_params = []} {
    return
  }
}

module attributes {stable_mosaic.version = 11 : i64} {
  func.func private @main(%arg0: i32) attributes {dimension_semantics = [#tpu.dimension_semantics<core_parallel>], iteration_bounds = array<i64: 2>, tpu.core_type = #tpu.core_type<sc_scalar_subcore>, window_params = []} {
    return
  }
}

module attributes {stable_mosaic.version = 11 : i64} {
  func.func @_gcn_layer_kernel(%arg0: i32, %arg1: i32, %arg2: memref<128x128xbf16, #tpu.memory_space<vmem>>, %arg3: memref<128x128xbf16, #tpu.memory_space<vmem>>, %arg4: memref<128x128xbf16, #tpu.memory_space<vmem>>, %arg5: memref<1x128xf32, #tpu.memory_space<vmem>>, %arg6: memref<128x128xbf16, #tpu.memory_space<vmem>>, %arg7: memref<128x128xf32, #tpu.memory_space<vmem>>) attributes {dimension_semantics = [#tpu.dimension_semantics<parallel>, #tpu.dimension_semantics<arbitrary>], iteration_bounds = array<i64: 1, 1>, scalar_prefetch = 0 : i64, scratch_operands = 1 : i64, tpu.core_type = #tpu.core_type<tc>, window_params = [{transform_indices = @transform_0, window_bounds = array<i64: 128, 128>}, {transform_indices = @transform_1, window_bounds = array<i64: 128, 128>}, {pipeline_mode = #tpu.pipeline_mode<synchronous>, transform_indices = @transform_2, window_bounds = array<i64: 128, 128>}, {pipeline_mode = #tpu.pipeline_mode<synchronous>, transform_indices = @transform_3, window_bounds = array<i64: 1, 128>}, {transform_indices = @transform_4, window_bounds = array<i64: 128, 128>}]} {
    %c0_i32 = arith.constant 0 : i32
    %0 = arith.cmpi eq, %arg1, %c0_i32 : i32
    %1 = arith.extui %0 : i1 to i32
    %c0_i32_0 = arith.constant 0 : i32
    %2 = arith.cmpi ne, %1, %c0_i32_0 : i32
    scf.if %2 {
      %cst_13 = arith.constant 0.000000e+00 : f32
      %15 = vector.broadcast %cst_13 : f32 to vector<128x128xf32>
      %c0_14 = arith.constant 0 : index
      %c0_15 = arith.constant 0 : index
      %16 = vector.load %arg7[%c0_14, %c0_15] : memref<128x128xf32, #tpu.memory_space<vmem>>, vector<128x128xf32>
      tpu.vector_store %arg7[%c0_14, %c0_15], %15 {strides = array<i32>} : memref<128x128xf32, #tpu.memory_space<vmem>>, vector<128x128xf32>,
    } else {
    }
    %c0 = arith.constant 0 : index
    %c0_1 = arith.constant 0 : index
    %3 = vector.load %arg3[%c0, %c0_1] : memref<128x128xbf16, #tpu.memory_space<vmem>>, vector<128x128xbf16>
    %c0_2 = arith.constant 0 : index
    %c0_3 = arith.constant 0 : index
    %4 = vector.load %arg4[%c0_2, %c0_3] : memref<128x128xbf16, #tpu.memory_space<vmem>>, vector<128x128xbf16>
    %cst = arith.constant dense<0.000000e+00> : vector<128x128xf32>
    %5 = tpu.matmul %3, %4, %cst {dimension_numbers = #tpu.dot_dimension_numbers<[1], [0], [0], [1], [0, 0, 1, 1], [], []>} : vector<128x128xbf16>, vector<128x128xbf16>, vector<128x128xf32> -> vector<128x128xf32>
    %c0_4 = arith.constant 0 : index
    %c0_5 = arith.constant 0 : index
    %6 = vector.load %arg7[%c0_4, %c0_5] : memref<128x128xf32, #tpu.memory_space<vmem>>, vector<128x128xf32>
    %c0_6 = arith.constant 0 : index
    %c0_7 = arith.constant 0 : index
    %7 = vector.load %arg2[%c0_6, %c0_7] : memref<128x128xbf16, #tpu.memory_space<vmem>>, vector<128x128xbf16>
    %8 = arith.truncf %5 : vector<128x128xf32> to vector<128x128xbf16>
    %cst_8 = arith.constant dense<0.000000e+00> : vector<128x128xf32>
    %9 = tpu.matmul %7, %8, %cst_8 {dimension_numbers = #tpu.dot_dimension_numbers<[1], [0], [0], [1], [0, 0, 1, 1], [], []>} : vector<128x128xbf16>, vector<128x128xbf16>, vector<128x128xf32> -> vector<128x128xf32>
    %10 = arith.addf %6, %9 : vector<128x128xf32>
    %c0_9 = arith.constant 0 : index
    %c0_10 = arith.constant 0 : index
    %11 = vector.load %arg7[%c0_9, %c0_10] : memref<128x128xf32, #tpu.memory_space<vmem>>, vector<128x128xf32>
    tpu.vector_store %arg7[%c0_9, %c0_10], %10 {strides = array<i32>} : memref<128x128xf32, #tpu.memory_space<vmem>>, vector<128x128xf32>,
    %c0_i32_11 = arith.constant 0 : i32
    %12 = arith.cmpi eq, %arg1, %c0_i32_11 : i32
    %13 = arith.extui %12 : i1 to i32
    %c0_i32_12 = arith.constant 0 : i32
    %14 = arith.cmpi ne, %13, %c0_i32_12 : i32
    scf.if %14 {
      %c0_13 = arith.constant 0 : index
      %c0_14 = arith.constant 0 : index
      %15 = vector.load %arg7[%c0_13, %c0_14] : memref<128x128xf32, #tpu.memory_space<vmem>>, vector<128x128xf32>
      %c0_15 = arith.constant 0 : index
      %c0_16 = arith.constant 0 : index
      %16 = vector.load %arg5[%c0_15, %c0_16] : memref<1x128xf32, #tpu.memory_space<vmem>>, vector<1x128xf32>
      %17 = vector.broadcast %16 : vector<1x128xf32> to vector<128x128xf32>
      %18 = arith.addf %15, %17 : vector<128x128xf32>
      %cst_17 = arith.constant 0.000000e+00 : f32
      %19 = vector.broadcast %cst_17 : f32 to vector<128x128xf32>
      %20 = arith.maximumf %18, %19 : vector<128x128xf32>
      %21 = arith.truncf %20 : vector<128x128xf32> to vector<128x128xbf16>
      %c0_18 = arith.constant 0 : index
      %c0_19 = arith.constant 0 : index
      %22 = vector.load %arg6[%c0_18, %c0_19] : memref<128x128xbf16, #tpu.memory_space<vmem>>, vector<128x128xbf16>
      tpu.vector_store %arg6[%c0_18, %c0_19], %21 {strides = array<i32>} : memref<128x128xbf16, #tpu.memory_space<vmem>>, vector<128x128xbf16>,
    } else {
    }
    return
  }
  func.func @transform_0(%arg0: i32, %arg1: i32) -> (i32, i32) {
    %c0_i32 = arith.constant 0 : i32
    return %arg0, %arg1 : i32, i32
  }
  func.func @transform_1(%arg0: i32, %arg1: i32) -> (i32, i32) {
    %c0_i32 = arith.constant 0 : i32
    %c0_i32_0 = arith.constant 0 : i32
    return %arg1, %c0_i32 : i32, i32
  }
  func.func @transform_2(%arg0: i32, %arg1: i32) -> (i32, i32) {
    %c0_i32 = arith.constant 0 : i32
    %c0_i32_0 = arith.constant 0 : i32
    %c0_i32_1 = arith.constant 0 : i32
    return %c0_i32, %c0_i32_0 : i32, i32
  }
  func.func @transform_3(%arg0: i32, %arg1: i32) -> (i32, i32) {
    %c0_i32 = arith.constant 0 : i32
    %c0_i32_0 = arith.constant 0 : i32
    %c0_i32_1 = arith.constant 0 : i32
    return %c0_i32, %c0_i32_0 : i32, i32
  }
  func.func @transform_4(%arg0: i32, %arg1: i32) -> (i32, i32) {
    %c0_i32 = arith.constant 0 : i32
    %c0_i32_0 = arith.constant 0 : i32
    return %arg0, %c0_i32 : i32, i32
  }
}

module attributes {stable_mosaic.version = 11 : i64} {
  func.func @_gcn_layer_kernel(%arg0: i32, %arg1: i32, %arg2: memref<128x128xbf16, #tpu.memory_space<vmem>>, %arg3: memref<128x128xbf16, #tpu.memory_space<vmem>>, %arg4: memref<128x128xbf16, #tpu.memory_space<vmem>>, %arg5: memref<1x128xf32, #tpu.memory_space<vmem>>, %arg6: memref<128x128xf32, #tpu.memory_space<vmem>>) attributes {dimension_semantics = [#tpu.dimension_semantics<parallel>, #tpu.dimension_semantics<arbitrary>], iteration_bounds = array<i64: 1, 1>, scalar_prefetch = 0 : i64, scratch_operands = 0 : i64, tpu.core_type = #tpu.core_type<tc>, window_params = [{transform_indices = @transform_0, window_bounds = array<i64: 128, 128>}, {transform_indices = @transform_1, window_bounds = array<i64: 128, 128>}, {pipeline_mode = #tpu.pipeline_mode<synchronous>, transform_indices = @transform_2, window_bounds = array<i64: 128, 128>}, {pipeline_mode = #tpu.pipeline_mode<synchronous>, transform_indices = @transform_3, window_bounds = array<i64: 1, 128>}, {transform_indices = @transform_4, window_bounds = array<i64: 128, 128>}]} {
    %c0_i32 = arith.constant 0 : i32
    %0 = arith.cmpi eq, %arg1, %c0_i32 : i32
    %1 = arith.extui %0 : i1 to i32
    %c0_i32_0 = arith.constant 0 : i32
    %2 = arith.cmpi ne, %1, %c0_i32_0 : i32
    scf.if %2 {
      %cst_13 = arith.constant 0.000000e+00 : f32
      %15 = vector.broadcast %cst_13 : f32 to vector<128x128xf32>
      %c0_14 = arith.constant 0 : index
      %c0_15 = arith.constant 0 : index
      %16 = vector.load %arg6[%c0_14, %c0_15] : memref<128x128xf32, #tpu.memory_space<vmem>>, vector<128x128xf32>
      tpu.vector_store %arg6[%c0_14, %c0_15], %15 {strides = array<i32>} : memref<128x128xf32, #tpu.memory_space<vmem>>, vector<128x128xf32>,
    } else {
    }
    %c0 = arith.constant 0 : index
    %c0_1 = arith.constant 0 : index
    %3 = vector.load %arg3[%c0, %c0_1] : memref<128x128xbf16, #tpu.memory_space<vmem>>, vector<128x128xbf16>
    %c0_2 = arith.constant 0 : index
    %c0_3 = arith.constant 0 : index
    %4 = vector.load %arg4[%c0_2, %c0_3] : memref<128x128xbf16, #tpu.memory_space<vmem>>, vector<128x128xbf16>
    %cst = arith.constant dense<0.000000e+00> : vector<128x128xf32>
    %5 = tpu.matmul %3, %4, %cst {dimension_numbers = #tpu.dot_dimension_numbers<[1], [0], [0], [1], [0, 0, 1, 1], [], []>} : vector<128x128xbf16>, vector<128x128xbf16>, vector<128x128xf32> -> vector<128x128xf32>
    %c0_4 = arith.constant 0 : index
    %c0_5 = arith.constant 0 : index
    %6 = vector.load %arg6[%c0_4, %c0_5] : memref<128x128xf32, #tpu.memory_space<vmem>>, vector<128x128xf32>
    %c0_6 = arith.constant 0 : index
    %c0_7 = arith.constant 0 : index
    %7 = vector.load %arg2[%c0_6, %c0_7] : memref<128x128xbf16, #tpu.memory_space<vmem>>, vector<128x128xbf16>
    %8 = arith.truncf %5 : vector<128x128xf32> to vector<128x128xbf16>
    %cst_8 = arith.constant dense<0.000000e+00> : vector<128x128xf32>
    %9 = tpu.matmul %7, %8, %cst_8 {dimension_numbers = #tpu.dot_dimension_numbers<[1], [0], [0], [1], [0, 0, 1, 1], [], []>} : vector<128x128xbf16>, vector<128x128xbf16>, vector<128x128xf32> -> vector<128x128xf32>
    %10 = arith.addf %6, %9 : vector<128x128xf32>
    %c0_9 = arith.constant 0 : index
    %c0_10 = arith.constant 0 : index
    %11 = vector.load %arg6[%c0_9, %c0_10] : memref<128x128xf32, #tpu.memory_space<vmem>>, vector<128x128xf32>
    tpu.vector_store %arg6[%c0_9, %c0_10], %10 {strides = array<i32>} : memref<128x128xf32, #tpu.memory_space<vmem>>, vector<128x128xf32>,
    %c0_i32_11 = arith.constant 0 : i32
    %12 = arith.cmpi eq, %arg1, %c0_i32_11 : i32
    %13 = arith.extui %12 : i1 to i32
    %c0_i32_12 = arith.constant 0 : i32
    %14 = arith.cmpi ne, %13, %c0_i32_12 : i32
    scf.if %14 {
      %c0_13 = arith.constant 0 : index
      %c0_14 = arith.constant 0 : index
      %15 = vector.load %arg6[%c0_13, %c0_14] : memref<128x128xf32, #tpu.memory_space<vmem>>, vector<128x128xf32>
      %c0_15 = arith.constant 0 : index
      %c0_16 = arith.constant 0 : index
      %16 = vector.load %arg5[%c0_15, %c0_16] : memref<1x128xf32, #tpu.memory_space<vmem>>, vector<1x128xf32>
      %17 = vector.broadcast %16 : vector<1x128xf32> to vector<128x128xf32>
      %18 = arith.addf %15, %17 : vector<128x128xf32>
      %c0_17 = arith.constant 0 : index
      %c0_18 = arith.constant 0 : index
      %19 = vector.load %arg6[%c0_17, %c0_18] : memref<128x128xf32, #tpu.memory_space<vmem>>, vector<128x128xf32>
      tpu.vector_store %arg6[%c0_17, %c0_18], %18 {strides = array<i32>} : memref<128x128xf32, #tpu.memory_space<vmem>>, vector<128x128xf32>,
    } else {
    }
    return
  }
  func.func @transform_0(%arg0: i32, %arg1: i32) -> (i32, i32) {
    %c0_i32 = arith.constant 0 : i32
    return %arg0, %arg1 : i32, i32
  }
  func.func @transform_1(%arg0: i32, %arg1: i32) -> (i32, i32) {
    %c0_i32 = arith.constant 0 : i32
    %c0_i32_0 = arith.constant 0 : i32
    return %arg1, %c0_i32 : i32, i32
  }
  func.func @transform_2(%arg0: i32, %arg1: i32) -> (i32, i32) {
    %c0_i32 = arith.constant 0 : i32
    %c0_i32_0 = arith.constant 0 : i32
    %c0_i32_1 = arith.constant 0 : i32
    return %c0_i32, %c0_i32_0 : i32, i32
  }
  func.func @transform_3(%arg0: i32, %arg1: i32) -> (i32, i32) {
    %c0_i32 = arith.constant 0 : i32
    %c0_i32_0 = arith.constant 0 : i32
    %c0_i32_1 = arith.constant 0 : i32
    return %c0_i32, %c0_i32_0 : i32, i32
  }
  func.func @transform_4(%arg0: i32, %arg1: i32) -> (i32, i32) {
    %c0_i32 = arith.constant 0 : i32
    %c0_i32_0 = arith.constant 0 : i32
    return %arg0, %c0_i32 : i32, i32
  }
}

</mosaic_0001>

<llo_original>
// kernel: gcn_encoder_forward.3
$region0: #{gcn_encoder_forward.3}
  #allocation0 [shape = 'u32[]', space=smem, size = 0x4, offset = 0x4, fixed_abs, tag = 'smem constant byte address 0x4 - core index']
  #allocation1 [shape = 'u32[144,128]{1,0:T(1,128)}', space=vmem, size = 0x12000, scoped, tag = 'internal scratch']
  %s0 = inlined_call_operand.vmem [shape: bf16[128,128], index: 0, kind: input, shape index: {}]
  %s1 = inlined_call_operand.vmem [shape: bf16[128,128], index: 1, kind: input, shape index: {}]
  %s2 = inlined_call_operand.vmem [shape: bf16[128,128], index: 2, kind: input, shape index: {}]
  %s3 = inlined_call_operand.vmem [shape: f32[1,128], index: 3, kind: input, shape index: {}]
  %s4 = inlined_call_operand.vmem [shape: f32[128,128], index: 4, kind: output, shape index: {}]
  %s5 = sld [smem:[#allocation0]]
  $region34: #{gcn_encoder_forward.3} parent=0
    _
  %s7 = ssub.s32 1, %s5
  %s8 = scalar_select 0, %s7, %s5
  // Predicated region
  $region2: #{gcn_encoder_forward.3} parent=0 // pred_check
    _
  $region3: #{gcn_encoder_forward.3} parent=0 // pred_check_branch
    %10 = sbr.rel (0) target = $region5
  $region4: #{gcn_encoder_forward.3} parent=0 // pred_region
    _
  $region5: #{gcn_encoder_forward.3} parent=0 // pred_fallthru
    _
  // Predicated region
  $region6: #{gcn_encoder_forward.3} parent=0 // pred_check
    _
  $region7: #{gcn_encoder_forward.3} parent=0 // pred_check_branch
    %12 = sbr.rel (0) target = $region9
  $region8: #{gcn_encoder_forward.3} parent=0 // pred_region
    _
  $region9: #{gcn_encoder_forward.3} parent=0 // pred_fallthru
    _
  // Predicated region
  $region10: #{gcn_encoder_forward.3} parent=0 // pred_check
    _
  $region11: #{gcn_encoder_forward.3} parent=0 // pred_check_branch
    %14 = sbr.rel (0) target = $region13
  $region12: #{gcn_encoder_forward.3} parent=0 // pred_region
    _
  $region13: #{gcn_encoder_forward.3} parent=0 // pred_fallthru
    _
  // Predicated region
  $region14: #{gcn_encoder_forward.3} parent=0 // pred_check
    _
  $region15: #{gcn_encoder_forward.3} parent=0 // pred_check_branch
    %16 = sbr.rel (0) target = $region17
  $region16: #{gcn_encoder_forward.3} parent=0 // pred_region
    _
  $region17: #{gcn_encoder_forward.3} parent=0 // pred_fallthru
    _
  %p18 = scmp.eq.s32.totalorder 0, 0
  // Predicated region
  $region18: #{gcn_encoder_forward.3} parent=0 // pred_check
    %p19 = pneg %p18
  $region19: #{gcn_encoder_forward.3} parent=0 // pred_check_branch
    %21 = sbr.rel (%p19) target = $region21
  $region20: #{gcn_encoder_forward.3} parent=0 // pred_region
    %22 = vst [vmem:[%s4] sm:$0xff] 0.0
    %23 = vst [vmem:[%s4 + $0x8] sm:$0xff] 0.0
    %24 = vst [vmem:[%s4 + $0x10] sm:$0xff] 0.0
    %25 = vst [vmem:[%s4 + $0x18] sm:$0xff] 0.0
    %26 = vst [vmem:[%s4 + $0x20] sm:$0xff] 0.0
    %27 = vst [vmem:[%s4 + $0x28] sm:$0xff] 0.0
    %28 = vst [vmem:[%s4 + $0x30] sm:$0xff] 0.0
    %29 = vst [vmem:[%s4 + $0x38] sm:$0xff] 0.0
    %30 = vst [vmem:[%s4 + $0x40] sm:$0xff] 0.0
    %31 = vst [vmem:[%s4 + $0x48] sm:$0xff] 0.0
    %32 = vst [vmem:[%s4 + $0x50] sm:$0xff] 0.0
    %33 = vst [vmem:[%s4 + $0x58] sm:$0xff] 0.0
    %34 = vst [vmem:[%s4 + $0x60] sm:$0xff] 0.0
    %35 = vst [vmem:[%s4 + $0x68] sm:$0xff] 0.0
    %36 = vst [vmem:[%s4 + $0x70] sm:$0xff] 0.0
    %37 = vst [vmem:[%s4 + $0x78] sm:$0xff] 0.0
  $region21: #{gcn_encoder_forward.3} parent=0 // pred_fallthru
    _
  %v38 = vld [vmem:[%s1] sm:$0xf]
  %v39 = vld [vmem:[%s1 + $0x4] sm:$0xf]
  %v40 = vld [vmem:[%s1 + $0x8] sm:$0xf]
  %v41 = vld [vmem:[%s1 + $0xc] sm:$0xf]
  %v42 = vld [vmem:[%s1 + $0x10] sm:$0xf]
  %v43 = vld [vmem:[%s1 + $0x14] sm:$0xf]
  %v44 = vld [vmem:[%s1 + $0x18] sm:$0xf]
  %v45 = vld [vmem:[%s1 + $0x1c] sm:$0xf]
  %v46 = vld [vmem:[%s1 + $0x20] sm:$0xf]
  %v47 = vld [vmem:[%s1 + $0x24] sm:$0xf]
  %v48 = vld [vmem:[%s1 + $0x28] sm:$0xf]
  %v49 = vld [vmem:[%s1 + $0x2c] sm:$0xf]
  %v50 = vld [vmem:[%s1 + $0x30] sm:$0xf]
  %v51 = vld [vmem:[%s1 + $0x34] sm:$0xf]
  %v52 = vld [vmem:[%s1 + $0x38] sm:$0xf]
  %v53 = vld [vmem:[%s1 + $0x3c] sm:$0xf]
  %v54 = vld [vmem:[%s2] sm:$0xf]
  %v55 = vld [vmem:[%s2 + $0x4] sm:$0xf]
  %v56 = vld [vmem:[%s2 + $0x8] sm:$0xf]
  %v57 = vld [vmem:[%s2 + $0xc] sm:$0xf]
  %v58 = vld [vmem:[%s2 + $0x10] sm:$0xf]
  %v59 = vld [vmem:[%s2 + $0x14] sm:$0xf]
  %v60 = vld [vmem:[%s2 + $0x18] sm:$0xf]
  %v61 = vld [vmem:[%s2 + $0x1c] sm:$0xf]
  %v62 = vld [vmem:[%s2 + $0x20] sm:$0xf]
  %v63 = vld [vmem:[%s2 + $0x24] sm:$0xf]
  %v64 = vld [vmem:[%s2 + $0x28] sm:$0xf]
  %v65 = vld [vmem:[%s2 + $0x2c] sm:$0xf]
  %v66 = vld [vmem:[%s2 + $0x30] sm:$0xf]
  %v67 = vld [vmem:[%s2 + $0x34] sm:$0xf]
  %v68 = vld [vmem:[%s2 + $0x38] sm:$0xf]
  %v69 = vld [vmem:[%s2 + $0x3c] sm:$0xf]
  %v86 = vunpack.c.l.b16 %v38
  %v87 = vunpack.c.l.b16 %v39
  %v88 = vunpack.c.l.b16 %v40
  %v89 = vunpack.c.l.b16 %v41
  %v90 = vunpack.c.l.b16 %v42
  %v91 = vunpack.c.l.b16 %v43
  %v92 = vunpack.c.l.b16 %v44
  %v93 = vunpack.c.l.b16 %v45
  %v94 = vunpack.c.l.b16 %v46
  %v95 = vunpack.c.l.b16 %v47
  %v96 = vunpack.c.l.b16 %v48
  %v97 = vunpack.c.l.b16 %v49
  %v98 = vunpack.c.l.b16 %v50
  %v99 = vunpack.c.l.b16 %v51
  %v100 = vunpack.c.l.b16 %v52
  %v101 = vunpack.c.l.b16 %v53
  %v102 = vpack.c.b16 %v87, %v86
  %v103 = vpack.c.b16 %v89, %v88
  %v104 = vpack.c.b16 %v91, %v90
  %v105 = vpack.c.b16 %v93, %v92
  %v106 = vpack.c.b16 %v95, %v94
  %v107 = vpack.c.b16 %v97, %v96
  %v108 = vpack.c.b16 %v99, %v98
  %v109 = vpack.c.b16 %v101, %v100
  %v134 = vunpack.c.l.b16 %v54
  %v135 = vunpack.c.l.b16 %v55
  %v136 = vunpack.c.l.b16 %v56
  %v137 = vunpack.c.l.b16 %v57
  %v138 = vunpack.c.l.b16 %v58
  %v139 = vunpack.c.l.b16 %v59
  %v140 = vunpack.c.l.b16 %v60
  %v141 = vunpack.c.l.b16 %v61
  %v142 = vunpack.c.l.b16 %v62
  %v143 = vunpack.c.l.b16 %v63
  %v144 = vunpack.c.l.b16 %v64
  %v145 = vunpack.c.l.b16 %v65
  %v146 = vunpack.c.l.b16 %v66
  %v147 = vunpack.c.l.b16 %v67
  %v148 = vunpack.c.l.b16 %v68
  %v149 = vunpack.c.l.b16 %v69
  %v150 = vpack.c.b16 %v135, %v134
  %v151 = vpack.c.b16 %v137, %v136
  %v152 = vpack.c.b16 %v139, %v138
  %v153 = vpack.c.b16 %v141, %v140
  %v154 = vpack.c.b16 %v143, %v142
  %v155 = vpack.c.b16 %v145, %v144
  %v156 = vpack.c.b16 %v147, %v146
  %v157 = vpack.c.b16 %v149, %v148
  %166 = vmatprep.subr.bf16.mxu0 0
  %167 = vmatpush1.bf16.msra.mxu0 %v150
  %168 = vmatprep.subr.bf16.mxu0 0
  %169 = vmatpush1.bf16.msra.mxu0 %v151
  %170 = vmatprep.subr.bf16.mxu0 0
  %171 = vmatpush1.bf16.msra.mxu0 %v152
  %172 = vmatprep.subr.bf16.mxu0 0
  %173 = vmatpush1.bf16.msra.mxu0 %v153
  %174 = vmatprep.subr.bf16.mxu0 0
  %175 = vmatpush1.bf16.msra.mxu0 %v154
  %176 = vmatprep.subr.bf16.mxu0 0
  %177 = vmatpush1.bf16.msra.mxu0 %v155
  %178 = vmatprep.subr.bf16.mxu0 0
  %179 = vmatpush1.bf16.msra.mxu0 %v156
  %180 = vmatprep.subr.bf16.mxu0 0
  %181 = vmatpush1.bf16.msra.mxu0 %v157
  %182 = vmatprep.subr.bf16.mxu0 0
  %183 = vmatpush1.bf16.msra.mxu0 0
  %184 = vmatprep.subr.bf16.mxu0 0
  %185 = vmatpush1.bf16.msra.mxu0 0
  %186 = vmatprep.subr.bf16.mxu0 0
  %187 = vmatpush1.bf16.msra.mxu0 0
  %188 = vmatprep.subr.bf16.mxu0 0
  %189 = vmatpush1.bf16.msra.mxu0 0
  %190 = vmatprep.subr.bf16.mxu0 0
  %191 = vmatpush1.bf16.msra.mxu0 0
  %192 = vmatprep.subr.bf16.mxu0 0
  %193 = vmatpush1.bf16.msra.mxu0 0
  %194 = vmatprep.subr.bf16.mxu0 0
  %195 = vmatpush1.bf16.msra.mxu0 0
  %196 = vmatprep.subr.bf16.mxu0 0
  %197 = vmatpush1.bf16.msra.mxu0 0
  %198 = vmatprep.mubr.bf16.mxu0 0
  %199 = vmatmul.mubr.bf16.gmra.mrb[0].mxu0 %v102
  %v200 = vpop.f32.mrb[0].mxu0
  %v201 = vadd.f32 0.0, %v200
  %v202 = vpop.f32.mrb[0].mxu0
  %v203 = vpop.f32.mrb[0].mxu0
  %v204 = vadd.f32 0.0, %v203
  %v205 = vpop.f32.mrb[0].mxu0
  %206 = vmatprep.mubr.bf16.mxu0 0
  %207 = vmatmul.mubr.bf16.gmra.mrb[0].mxu0 %v103
  %v208 = vpop.f32.mrb[0].mxu0
  %v209 = vadd.f32 0.0, %v208
  %v210 = vpop.f32.mrb[0].mxu0
  %v211 = vpop.f32.mrb[0].mxu0
  %v212 = vadd.f32 0.0, %v211
  %v213 = vpop.f32.mrb[0].mxu0
  %214 = vmatprep.mubr.bf16.mxu0 0
  %215 = vmatmul.mubr.bf16.gmra.mrb[0].mxu0 %v104
  %v216 = vpop.f32.mrb[0].mxu0
  %v217 = vadd.f32 0.0, %v216
  %v218 = vpop.f32.mrb[0].mxu0
  %v219 = vpop.f32.mrb[0].mxu0
  %v220 = vadd.f32 0.0, %v219
  %v221 = vpop.f32.mrb[0].mxu0
  %222 = vmatprep.mubr.bf16.mxu0 0
  %223 = vmatmul.mubr.bf16.gmra.mrb[0].mxu0 %v105
  %v224 = vpop.f32.mrb[0].mxu0
  %v225 = vadd.f32 0.0, %v224
  %v226 = vpop.f32.mrb[0].mxu0
  %v227 = vpop.f32.mrb[0].mxu0
  %v228 = vadd.f32 0.0, %v227
  %v229 = vpop.f32.mrb[0].mxu0
  %230 = vmatprep.mubr.bf16.mxu0 0
  %231 = vmatmul.mubr.bf16.gmra.mrb[0].mxu0 %v106
  %v232 = vpop.f32.mrb[0].mxu0
  %v233 = vadd.f32 0.0, %v232
  %v234 = vpop.f32.mrb[0].mxu0
  %v235 = vpop.f32.mrb[0].mxu0
  %v236 = vadd.f32 0.0, %v235
  %v237 = vpop.f32.mrb[0].mxu0
  %238 = vmatprep.mubr.bf16.mxu0 0
  %239 = vmatmul.mubr.bf16.gmra.mrb[0].mxu0 %v107
  %v240 = vpop.f32.mrb[0].mxu0
  %v241 = vadd.f32 0.0, %v240
  %v242 = vpop.f32.mrb[0].mxu0
  %v243 = vpop.f32.mrb[0].mxu0
  %v244 = vadd.f32 0.0, %v243
  %v245 = vpop.f32.mrb[0].mxu0
  %246 = vmatprep.mubr.bf16.mxu0 0
  %247 = vmatmul.mubr.bf16.gmra.mrb[0].mxu0 %v108
  %v248 = vpop.f32.mrb[0].mxu0
  %v249 = vadd.f32 0.0, %v248
  %v250 = vpop.f32.mrb[0].mxu0
  %v251 = vpop.f32.mrb[0].mxu0
  %v252 = vadd.f32 0.0, %v251
  %v253 = vpop.f32.mrb[0].mxu0
  %254 = vmatprep.mubr.bf16.mxu0 0
  %255 = vmatmul.mubr.bf16.gmra.mrb[0].mxu0 %v109
  %v256 = vpop.f32.mrb[0].mxu0
  %v257 = vadd.f32 0.0, %v256
  %v258 = vpop.f32.mrb[0].mxu0
  %v259 = vpop.f32.mrb[0].mxu0
  %v260 = vadd.f32 0.0, %v259
  %v261 = vpop.f32.mrb[0].mxu0
  %262 = vdwg.mxu0
  %v263 = vld [vmem:[%s4] sm:$0xff]
  %v264 = vld [vmem:[%s4 + $0x8] sm:$0xff]
  %v265 = vld [vmem:[%s4 + $0x10] sm:$0xff]
  %v266 = vld [vmem:[%s4 + $0x18] sm:$0xff]
  %v267 = vld [vmem:[%s4 + $0x20] sm:$0xff]
  %v268 = vld [vmem:[%s4 + $0x28] sm:$0xff]
  %v269 = vld [vmem:[%s4 + $0x30] sm:$0xff]
  %v270 = vld [vmem:[%s4 + $0x38] sm:$0xff]
  %v271 = vld [vmem:[%s4 + $0x40] sm:$0xff]
  %v272 = vld [vmem:[%s4 + $0x48] sm:$0xff]
  %v273 = vld [vmem:[%s4 + $0x50] sm:$0xff]
  %v274 = vld [vmem:[%s4 + $0x58] sm:$0xff]
  %v275 = vld [vmem:[%s4 + $0x60] sm:$0xff]
  %v276 = vld [vmem:[%s4 + $0x68] sm:$0xff]
  %v277 = vld [vmem:[%s4 + $0x70] sm:$0xff]
  %v278 = vld [vmem:[%s4 + $0x78] sm:$0xff]
  %v279 = vld [vmem:[%s0] sm:$0xf]
  %v280 = vld [vmem:[%s0 + $0x4] sm:$0xf]
  %v281 = vld [vmem:[%s0 + $0x8] sm:$0xf]
  %v282 = vld [vmem:[%s0 + $0xc] sm:$0xf]
  %v283 = vld [vmem:[%s0 + $0x10] sm:$0xf]
  %v284 = vld [vmem:[%s0 + $0x14] sm:$0xf]
  %v285 = vld [vmem:[%s0 + $0x18] sm:$0xf]
  %v286 = vld [vmem:[%s0 + $0x1c] sm:$0xf]
  %v287 = vld [vmem:[%s0 + $0x20] sm:$0xf]
  %v288 = vld [vmem:[%s0 + $0x24] sm:$0xf]
  %v289 = vld [vmem:[%s0 + $0x28] sm:$0xf]
  %v290 = vld [vmem:[%s0 + $0x2c] sm:$0xf]
  %v291 = vld [vmem:[%s0 + $0x30] sm:$0xf]
  %v292 = vld [vmem:[%s0 + $0x34] sm:$0xf]
  %v293 = vld [vmem:[%s0 + $0x38] sm:$0xf]
  %v294 = vld [vmem:[%s0 + $0x3c] sm:$0xf]
  %v295 = vpack.c.bf16 %v204, %v201
  %v296 = vpack.c.bf16 %v212, %v209
  %v297 = vpack.c.bf16 %v220, %v217
  %v298 = vpack.c.bf16 %v228, %v225
  %v299 = vpack.c.bf16 %v236, %v233
  %v300 = vpack.c.bf16 %v244, %v241
  %v301 = vpack.c.bf16 %v252, %v249
  %v302 = vpack.c.bf16 %v260, %v257
  %v319 = vunpack.c.l.b16 %v279
  %v320 = vunpack.c.l.b16 %v280
  %v321 = vunpack.c.l.b16 %v281
  %v322 = vunpack.c.l.b16 %v282
  %v323 = vunpack.c.l.b16 %v283
  %v324 = vunpack.c.l.b16 %v284
  %v325 = vunpack.c.l.b16 %v285
  %v326 = vunpack.c.l.b16 %v286
  %v327 = vunpack.c.l.b16 %v287
  %v328 = vunpack.c.l.b16 %v288
  %v329 = vunpack.c.l.b16 %v289
  %v330 = vunpack.c.l.b16 %v290
  %v331 = vunpack.c.l.b16 %v291
  %v332 = vunpack.c.l.b16 %v292
  %v333 = vunpack.c.l.b16 %v293
  %v334 = vunpack.c.l.b16 %v294
  %v335 = vpack.c.b16 %v320, %v319
  %v336 = vpack.c.b16 %v322, %v321
  %v337 = vpack.c.b16 %v324, %v323
  %v338 = vpack.c.b16 %v326, %v325
  %v339 = vpack.c.b16 %v328, %v327
  %v340 = vpack.c.b16 %v330, %v329
  %v341 = vpack.c.b16 %v332, %v331
  %v342 = vpack.c.b16 %v334, %v333
  %351 = vmatprep.subr.bf16.mxu0 0
  %352 = vmatpush1.bf16.msra.mxu0 %v295
  %353 = vmatprep.subr.bf16.mxu0 0
  %354 = vmatpush1.bf16.msra.mxu0 %v296
  %355 = vmatprep.subr.bf16.mxu0 0
  %356 = vmatpush1.bf16.msra.mxu0 %v297
  %357 = vmatprep.subr.bf16.mxu0 0
  %358 = vmatpush1.bf16.msra.mxu0 %v298
  %359 = vmatprep.subr.bf16.mxu0 0
  %360 = vmatpush1.bf16.msra.mxu0 %v299
  %361 = vmatprep.subr.bf16.mxu0 0
  %362 = vmatpush1.bf16.msra.mxu0 %v300
  %363 = vmatprep.subr.bf16.mxu0 0
  %364 = vmatpush1.bf16.msra.mxu0 %v301
  %365 = vmatprep.subr.bf16.mxu0 0
  %366 = vmatpush1.bf16.msra.mxu0 %v302
  %367 = vmatprep.subr.bf16.mxu0 0
  %368 = vmatpush1.bf16.msra.mxu0 0
  %369 = vmatprep.subr.bf16.mxu0 0
  %370 = vmatpush1.bf16.msra.mxu0 0
  %371 = vmatprep.subr.bf16.mxu0 0
  %372 = vmatpush1.bf16.msra.mxu0 0
  %373 = vmatprep.subr.bf16.mxu0 0
  %374 = vmatpush1.bf16.msra.mxu0 0
  %375 = vmatprep.subr.bf16.mxu0 0
  %376 = vmatpush1.bf16.msra.mxu0 0
  %377 = vmatprep.subr.bf16.mxu0 0
  %378 = vmatpush1.bf16.msra.mxu0 0
  %379 = vmatprep.subr.bf16.mxu0 0
  %380 = vmatpush1.bf16.msra.mxu0 0
  %381 = vmatprep.subr.bf16.mxu0 0
  %382 = vmatpush1.bf16.msra.mxu0 0
  %383 = vmatprep.mubr.bf16.mxu0 0
  %384 = vmatmul.mubr.bf16.gmra.mrb[0].mxu0 %v335
  %v385 = vpop.f32.mrb[0].mxu0
  %v386 = vadd.f32 0.0, %v385
  %v387 = vpop.f32.mrb[0].mxu0
  %v388 = vpop.f32.mrb[0].mxu0
  %v389 = vadd.f32 0.0, %v388
  %v390 = vpop.f32.mrb[0].mxu0
  %391 = vmatprep.mubr.bf16.mxu0 0
  %392 = vmatmul.mubr.bf16.gmra.mrb[0].mxu0 %v336
  %v393 = vpop.f32.mrb[0].mxu0
  %v394 = vadd.f32 0.0, %v393
  %v395 = vpop.f32.mrb[0].mxu0
  %v396 = vpop.f32.mrb[0].mxu0
  %v397 = vadd.f32 0.0, %v396
  %v398 = vpop.f32.mrb[0].mxu0
  %399 = vmatprep.mubr.bf16.mxu0 0
  %400 = vmatmul.mubr.bf16.gmra.mrb[0].mxu0 %v337
  %v401 = vpop.f32.mrb[0].mxu0
  %v402 = vadd.f32 0.0, %v401
  %v403 = vpop.f32.mrb[0].mxu0
  %v404 = vpop.f32.mrb[0].mxu0
  %v405 = vadd.f32 0.0, %v404
  %v406 = vpop.f32.mrb[0].mxu0
  %407 = vmatprep.mubr.bf16.mxu0 0
  %408 = vmatmul.mubr.bf16.gmra.mrb[0].mxu0 %v338
  %v409 = vpop.f32.mrb[0].mxu0
  %v410 = vadd.f32 0.0, %v409
  %v411 = vpop.f32.mrb[0].mxu0
  %v412 = vpop.f32.mrb[0].mxu0
  %v413 = vadd.f32 0.0, %v412
  %v414 = vpop.f32.mrb[0].mxu0
  %415 = vmatprep.mubr.bf16.mxu0 0
  %416 = vmatmul.mubr.bf16.gmra.mrb[0].mxu0 %v339
  %v417 = vpop.f32.mrb[0].mxu0
  %v418 = vadd.f32 0.0, %v417
  %v419 = vpop.f32.mrb[0].mxu0
  %v420 = vpop.f32.mrb[0].mxu0
  %v421 = vadd.f32 0.0, %v420
  %v422 = vpop.f32.mrb[0].mxu0
  %423 = vmatprep.mubr.bf16.mxu0 0
  %424 = vmatmul.mubr.bf16.gmra.mrb[0].mxu0 %v340
  %v425 = vpop.f32.mrb[0].mxu0
  %v426 = vadd.f32 0.0, %v425
  %v427 = vpop.f32.mrb[0].mxu0
  %v428 = vpop.f32.mrb[0].mxu0
  %v429 = vadd.f32 0.0, %v428
  %v430 = vpop.f32.mrb[0].mxu0
  %431 = vmatprep.mubr.bf16.mxu0 0
  %432 = vmatmul.mubr.bf16.gmra.mrb[0].mxu0 %v341
  %v433 = vpop.f32.mrb[0].mxu0
  %v434 = vadd.f32 0.0, %v433
  %v435 = vpop.f32.mrb[0].mxu0
  %v436 = vpop.f32.mrb[0].mxu0
  %v437 = vadd.f32 0.0, %v436
  %v438 = vpop.f32.mrb[0].mxu0
  %439 = vmatprep.mubr.bf16.mxu0 0
  %440 = vmatmul.mubr.bf16.gmra.mrb[0].mxu0 %v342
  %v441 = vpop.f32.mrb[0].mxu0
  %v442 = vadd.f32 0.0, %v441
  %v443 = vpop.f32.mrb[0].mxu0
  %v444 = vpop.f32.mrb[0].mxu0
  %v445 = vadd.f32 0.0, %v444
  %v446 = vpop.f32.mrb[0].mxu0
  %447 = vdwg.mxu0
  %v448 = vadd.f32 %v263, %v386
  %v449 = vadd.f32 %v264, %v389
  %v450 = vadd.f32 %v265, %v394
  %v451 = vadd.f32 %v266, %v397
  %v452 = vadd.f32 %v267, %v402
  %v453 = vadd.f32 %v268, %v405
  %v454 = vadd.f32 %v269, %v410
  %v455 = vadd.f32 %v270, %v413
  %v456 = vadd.f32 %v271, %v418
  %v457 = vadd.f32 %v272, %v421
  %v458 = vadd.f32 %v273, %v426
  %v459 = vadd.f32 %v274, %v429
  %v460 = vadd.f32 %v275, %v434
  %v461 = vadd.f32 %v276, %v437
  %v462 = vadd.f32 %v277, %v442
  %v463 = vadd.f32 %v278, %v445
  %464 = vst [vmem:[%s4] sm:$0xff] %v448
  %465 = vst [vmem:[%s4 + $0x8] sm:$0xff] %v449
  %466 = vst [vmem:[%s4 + $0x10] sm:$0xff] %v450
  %467 = vst [vmem:[%s4 + $0x18] sm:$0xff] %v451
  %468 = vst [vmem:[%s4 + $0x20] sm:$0xff] %v452
  %469 = vst [vmem:[%s4 + $0x28] sm:$0xff] %v453
  %470 = vst [vmem:[%s4 + $0x30] sm:$0xff] %v454
  %471 = vst [vmem:[%s4 + $0x38] sm:$0xff] %v455
  %472 = vst [vmem:[%s4 + $0x40] sm:$0xff] %v456
  %473 = vst [vmem:[%s4 + $0x48] sm:$0xff] %v457
  %474 = vst [vmem:[%s4 + $0x50] sm:$0xff] %v458
  %475 = vst [vmem:[%s4 + $0x58] sm:$0xff] %v459
  %476 = vst [vmem:[%s4 + $0x60] sm:$0xff] %v460
  %477 = vst [vmem:[%s4 + $0x68] sm:$0xff] %v461
  %478 = vst [vmem:[%s4 + $0x70] sm:$0xff] %v462
  %479 = vst [vmem:[%s4 + $0x78] sm:$0xff] %v463
  // Predicated region
  $region22: #{gcn_encoder_forward.3} parent=0 // pred_check
    %p480 = pneg %p18
  $region23: #{gcn_encoder_forward.3} parent=0 // pred_check_branch
    %482 = sbr.rel (%p480) target = $region25
  $region24: #{gcn_encoder_forward.3} parent=0 // pred_region
    %v483 = vld [vmem:[%s4] sm:$0xff]
    %v484 = vld [vmem:[%s4 + $0x8] sm:$0xff]
    %v485 = vld [vmem:[%s4 + $0x10] sm:$0xff]
    %v486 = vld [vmem:[%s4 + $0x18] sm:$0xff]
    %v487 = vld [vmem:[%s4 + $0x20] sm:$0xff]
    %v488 = vld [vmem:[%s4 + $0x28] sm:$0xff]
    %v489 = vld [vmem:[%s4 + $0x30] sm:$0xff]
    %v490 = vld [vmem:[%s4 + $0x38] sm:$0xff]
    %v491 = vld [vmem:[%s4 + $0x40] sm:$0xff]
    %v492 = vld [vmem:[%s4 + $0x48] sm:$0xff]
    %v493 = vld [vmem:[%s4 + $0x50] sm:$0xff]
    %v494 = vld [vmem:[%s4 + $0x58] sm:$0xff]
    %v495 = vld [vmem:[%s4 + $0x60] sm:$0xff]
    %v496 = vld [vmem:[%s4 + $0x68] sm:$0xff]
    %v497 = vld [vmem:[%s4 + $0x70] sm:$0xff]
    %v498 = vld [vmem:[%s4 + $0x78] sm:$0xff]
    %v499 = vld [vmem:[%s3] sm:$0x1]
    %v501 = vlaneseq
    %v502 = vshrl.u32 %v501, 7
    %v503 = vsub.s32 0, %v502
    %v504 = vrot.slane %v499, %v503
    %v506 = vadd.f32 %v483, %v504
    %v507 = vadd.f32 %v484, %v504
    %v508 = vadd.f32 %v485, %v504
    %v509 = vadd.f32 %v486, %v504
    %v510 = vadd.f32 %v487, %v504
    %v511 = vadd.f32 %v488, %v504
    %v512 = vadd.f32 %v489, %v504
    %v513 = vadd.f32 %v490, %v504
    %v514 = vadd.f32 %v491, %v504
    %v515 = vadd.f32 %v492, %v504
    %v516 = vadd.f32 %v493, %v504
    %v517 = vadd.f32 %v494, %v504
    %v518 = vadd.f32 %v495, %v504
    %v519 = vadd.f32 %v496, %v504
    %v520 = vadd.f32 %v497, %v504
    %v521 = vadd.f32 %v498, %v504
    %522 = vst [vmem:[%s4] sm:$0xff] %v506
    %523 = vst [vmem:[%s4 + $0x8] sm:$0xff] %v507
    %524 = vst [vmem:[%s4 + $0x10] sm:$0xff] %v508
    %525 = vst [vmem:[%s4 + $0x18] sm:$0xff] %v509
    %526 = vst [vmem:[%s4 + $0x20] sm:$0xff] %v510
    %527 = vst [vmem:[%s4 + $0x28] sm:$0xff] %v511
    %528 = vst [vmem:[%s4 + $0x30] sm:$0xff] %v512
    %529 = vst [vmem:[%s4 + $0x38] sm:$0xff] %v513
    %530 = vst [vmem:[%s4 + $0x40] sm:$0xff] %v514
    %531 = vst [vmem:[%s4 + $0x48] sm:$0xff] %v515
    %532 = vst [vmem:[%s4 + $0x50] sm:$0xff] %v516
    %533 = vst [vmem:[%s4 + $0x58] sm:$0xff] %v517
    %534 = vst [vmem:[%s4 + $0x60] sm:$0xff] %v518
    %535 = vst [vmem:[%s4 + $0x68] sm:$0xff] %v519
    %536 = vst [vmem:[%s4 + $0x70] sm:$0xff] %v520
    %537 = vst [vmem:[%s4 + $0x78] sm:$0xff] %v521
  $region25: #{gcn_encoder_forward.3} parent=0 // pred_fallthru
    _
  // Predicated region
  $region26: #{gcn_encoder_forward.3} parent=0 // pred_check
    _
  $region27: #{gcn_encoder_forward.3} parent=0 // pred_check_branch
    %539 = sbr.rel (0) target = $region29
  $region28: #{gcn_encoder_forward.3} parent=0 // pred_region
    _
  $region29: #{gcn_encoder_forward.3} parent=0 // pred_fallthru
    _
  // Predicated region
  $region30: #{gcn_encoder_forward.3} parent=0 // pred_check
    _
  $region31: #{gcn_encoder_forward.3} parent=0 // pred_check_branch
    %541 = sbr.rel (0) target = $region33
  $region32: #{gcn_encoder_forward.3} parent=0 // pred_region
    _
  $region33: #{gcn_encoder_forward.3} parent=0 // pred_fallthru
    _

// kernel: gcn_encoder_forward.2
$region0: #{gcn_encoder_forward.2}
  #allocation0 [shape = 'u32[]', space=smem, size = 0x4, offset = 0x4, fixed_abs, tag = 'smem constant byte address 0x4 - core index']
  #allocation1 [shape = 'u32[144,128]{1,0:T(1,128)}', space=vmem, size = 0x12000, scoped, tag = 'internal scratch']
  #allocation2 [shape = 'f32[128,128]{1,0:T(8,128)}', space=vmem, size = 0x10000, scoped, tag = 'scratch operand']
  %s0 = inlined_call_operand.vmem [shape: bf16[128,128], index: 0, kind: input, shape index: {}]
  %s1 = inlined_call_operand.vmem [shape: bf16[128,128], index: 1, kind: input, shape index: {}]
  %s2 = inlined_call_operand.vmem [shape: bf16[128,128], index: 2, kind: input, shape index: {}]
  %s3 = inlined_call_operand.vmem [shape: f32[1,128], index: 3, kind: input, shape index: {}]
  %s4 = inlined_call_operand.vmem [shape: bf16[128,128], index: 4, kind: output, shape index: {}]
  %s5 = sld [smem:[#allocation0]]
  $region34: #{gcn_encoder_forward.2} parent=0
    _
  %s7 = ssub.s32 1, %s5
  %s8 = scalar_select 0, %s7, %s5
  // Predicated region
  $region2: #{gcn_encoder_forward.2} parent=0 // pred_check
    _
  $region3: #{gcn_encoder_forward.2} parent=0 // pred_check_branch
    %10 = sbr.rel (0) target = $region5
  $region4: #{gcn_encoder_forward.2} parent=0 // pred_region
    _
  $region5: #{gcn_encoder_forward.2} parent=0 // pred_fallthru
    _
  // Predicated region
  $region6: #{gcn_encoder_forward.2} parent=0 // pred_check
    _
  $region7: #{gcn_encoder_forward.2} parent=0 // pred_check_branch
    %12 = sbr.rel (0) target = $region9
  $region8: #{gcn_encoder_forward.2} parent=0 // pred_region
    _
  $region9: #{gcn_encoder_forward.2} parent=0 // pred_fallthru
    _
  // Predicated region
  $region10: #{gcn_encoder_forward.2} parent=0 // pred_check
    _
  $region11: #{gcn_encoder_forward.2} parent=0 // pred_check_branch
    %14 = sbr.rel (0) target = $region13
  $region12: #{gcn_encoder_forward.2} parent=0 // pred_region
    _
  $region13: #{gcn_encoder_forward.2} parent=0 // pred_fallthru
    _
  // Predicated region
  $region14: #{gcn_encoder_forward.2} parent=0 // pred_check
    _
  $region15: #{gcn_encoder_forward.2} parent=0 // pred_check_branch
    %16 = sbr.rel (0) target = $region17
  $region16: #{gcn_encoder_forward.2} parent=0 // pred_region
    _
  $region17: #{gcn_encoder_forward.2} parent=0 // pred_fallthru
    _
  %p18 = scmp.eq.s32.totalorder 0, 0
  // Predicated region
  $region18: #{gcn_encoder_forward.2} parent=0 // pred_check
    %p19 = pneg %p18
  $region19: #{gcn_encoder_forward.2} parent=0 // pred_check_branch
    %21 = sbr.rel (%p19) target = $region21
  $region20: #{gcn_encoder_forward.2} parent=0 // pred_region
    %22 = vst [vmem:[#allocation2] sm:$0xff] 0.0
    %23 = vst [vmem:[#allocation2 + $0x8] sm:$0xff] 0.0
    %24 = vst [vmem:[#allocation2 + $0x10] sm:$0xff] 0.0
    %25 = vst [vmem:[#allocation2 + $0x18] sm:$0xff] 0.0
    %26 = vst [vmem:[#allocation2 + $0x20] sm:$0xff] 0.0
    %27 = vst [vmem:[#allocation2 + $0x28] sm:$0xff] 0.0
    %28 = vst [vmem:[#allocation2 + $0x30] sm:$0xff] 0.0
    %29 = vst [vmem:[#allocation2 + $0x38] sm:$0xff] 0.0
    %30 = vst [vmem:[#allocation2 + $0x40] sm:$0xff] 0.0
    %31 = vst [vmem:[#allocation2 + $0x48] sm:$0xff] 0.0
    %32 = vst [vmem:[#allocation2 + $0x50] sm:$0xff] 0.0
    %33 = vst [vmem:[#allocation2 + $0x58] sm:$0xff] 0.0
    %34 = vst [vmem:[#allocation2 + $0x60] sm:$0xff] 0.0
    %35 = vst [vmem:[#allocation2 + $0x68] sm:$0xff] 0.0
    %36 = vst [vmem:[#allocation2 + $0x70] sm:$0xff] 0.0
    %37 = vst [vmem:[#allocation2 + $0x78] sm:$0xff] 0.0
  $region21: #{gcn_encoder_forward.2} parent=0 // pred_fallthru
    _
  %v38 = vld [vmem:[%s1] sm:$0xf]
  %v39 = vld [vmem:[%s1 + $0x4] sm:$0xf]
  %v40 = vld [vmem:[%s1 + $0x8] sm:$0xf]
  %v41 = vld [vmem:[%s1 + $0xc] sm:$0xf]
  %v42 = vld [vmem:[%s1 + $0x10] sm:$0xf]
  %v43 = vld [vmem:[%s1 + $0x14] sm:$0xf]
  %v44 = vld [vmem:[%s1 + $0x18] sm:$0xf]
  %v45 = vld [vmem:[%s1 + $0x1c] sm:$0xf]
  %v46 = vld [vmem:[%s1 + $0x20] sm:$0xf]
  %v47 = vld [vmem:[%s1 + $0x24] sm:$0xf]
  %v48 = vld [vmem:[%s1 + $0x28] sm:$0xf]
  %v49 = vld [vmem:[%s1 + $0x2c] sm:$0xf]
  %v50 = vld [vmem:[%s1 + $0x30] sm:$0xf]
  %v51 = vld [vmem:[%s1 + $0x34] sm:$0xf]
  %v52 = vld [vmem:[%s1 + $0x38] sm:$0xf]
  %v53 = vld [vmem:[%s1 + $0x3c] sm:$0xf]
  %v54 = vld [vmem:[%s2] sm:$0xf]
  %v55 = vld [vmem:[%s2 + $0x4] sm:$0xf]
  %v56 = vld [vmem:[%s2 + $0x8] sm:$0xf]
  %v57 = vld [vmem:[%s2 + $0xc] sm:$0xf]
  %v58 = vld [vmem:[%s2 + $0x10] sm:$0xf]
  %v59 = vld [vmem:[%s2 + $0x14] sm:$0xf]
  %v60 = vld [vmem:[%s2 + $0x18] sm:$0xf]
  %v61 = vld [vmem:[%s2 + $0x1c] sm:$0xf]
  %v62 = vld [vmem:[%s2 + $0x20] sm:$0xf]
  %v63 = vld [vmem:[%s2 + $0x24] sm:$0xf]
  %v64 = vld [vmem:[%s2 + $0x28] sm:$0xf]
  %v65 = vld [vmem:[%s2 + $0x2c] sm:$0xf]
  %v66 = vld [vmem:[%s2 + $0x30] sm:$0xf]
  %v67 = vld [vmem:[%s2 + $0x34] sm:$0xf]
  %v68 = vld [vmem:[%s2 + $0x38] sm:$0xf]
  %v69 = vld [vmem:[%s2 + $0x3c] sm:$0xf]
  %v86 = vunpack.c.l.b16 %v38
  %v87 = vunpack.c.l.b16 %v39
  %v88 = vunpack.c.l.b16 %v40
  %v89 = vunpack.c.l.b16 %v41
  %v90 = vunpack.c.l.b16 %v42
  %v91 = vunpack.c.l.b16 %v43
  %v92 = vunpack.c.l.b16 %v44
  %v93 = vunpack.c.l.b16 %v45
  %v94 = vunpack.c.l.b16 %v46
  %v95 = vunpack.c.l.b16 %v47
  %v96 = vunpack.c.l.b16 %v48
  %v97 = vunpack.c.l.b16 %v49
  %v98 = vunpack.c.l.b16 %v50
  %v99 = vunpack.c.l.b16 %v51
  %v100 = vunpack.c.l.b16 %v52
  %v101 = vunpack.c.l.b16 %v53
  %v102 = vpack.c.b16 %v87, %v86
  %v103 = vpack.c.b16 %v89, %v88
  %v104 = vpack.c.b16 %v91, %v90
  %v105 = vpack.c.b16 %v93, %v92
  %v106 = vpack.c.b16 %v95, %v94
  %v107 = vpack.c.b16 %v97, %v96
  %v108 = vpack.c.b16 %v99, %v98
  %v109 = vpack.c.b16 %v101, %v100
  %v134 = vunpack.c.l.b16 %v54
  %v135 = vunpack.c.l.b16 %v55
  %v136 = vunpack.c.l.b16 %v56
  %v137 = vunpack.c.l.b16 %v57
  %v138 = vunpack.c.l.b16 %v58
  %v139 = vunpack.c.l.b16 %v59
  %v140 = vunpack.c.l.b16 %v60
  %v141 = vunpack.c.l.b16 %v61
  %v142 = vunpack.c.l.b16 %v62
  %v143 = vunpack.c.l.b16 %v63
  %v144 = vunpack.c.l.b16 %v64
  %v145 = vunpack.c.l.b16 %v65
  %v146 = vunpack.c.l.b16 %v66
  %v147 = vunpack.c.l.b16 %v67
  %v148 = vunpack.c.l.b16 %v68
  %v149 = vunpack.c.l.b16 %v69
  %v150 = vpack.c.b16 %v135, %v134
  %v151 = vpack.c.b16 %v137, %v136
  %v152 = vpack.c.b16 %v139, %v138
  %v153 = vpack.c.b16 %v141, %v140
  %v154 = vpack.c.b16 %v143, %v142
  %v155 = vpack.c.b16 %v145, %v144
  %v156 = vpack.c.b16 %v147, %v146
  %v157 = vpack.c.b16 %v149, %v148
  %166 = vmatprep.subr.bf16.mxu0 0
  %167 = vmatpush1.bf16.msra.mxu0 %v150
  %168 = vmatprep.subr.bf16.mxu0 0
  %169 = vmatpush1.bf16.msra.mxu0 %v151
  %170 = vmatprep.subr.bf16.mxu0 0
  %171 = vmatpush1.bf16.msra.mxu0 %v152
  %172 = vmatprep.subr.bf16.mxu0 0
  %173 = vmatpush1.bf16.msra.mxu0 %v153
  %174 = vmatprep.subr.bf16.mxu0 0
  %175 = vmatpush1.bf16.msra.mxu0 %v154
  %176 = vmatprep.subr.bf16.mxu0 0
  %177 = vmatpush1.bf16.msra.mxu0 %v155
  %178 = vmatprep.subr.bf16.mxu0 0
  %179 = vmatpush1.bf16.msra.mxu0 %v156
  %180 = vmatprep.subr.bf16.mxu0 0
  %181 = vmatpush1.bf16.msra.mxu0 %v157
  %182 = vmatprep.subr.bf16.mxu0 0
  %183 = vmatpush1.bf16.msra.mxu0 0
  %184 = vmatprep.subr.bf16.mxu0 0
  %185 = vmatpush1.bf16.msra.mxu0 0
  %186 = vmatprep.subr.bf16.mxu0 0
  %187 = vmatpush1.bf16.msra.mxu0 0
  %188 = vmatprep.subr.bf16.mxu0 0
  %189 = vmatpush1.bf16.msra.mxu0 0
  %190 = vmatprep.subr.bf16.mxu0 0
  %191 = vmatpush1.bf16.msra.mxu0 0
  %192 = vmatprep.subr.bf16.mxu0 0
  %193 = vmatpush1.bf16.msra.mxu0 0
  %194 = vmatprep.subr.bf16.mxu0 0
  %195 = vmatpush1.bf16.msra.mxu0 0
  %196 = vmatprep.subr.bf16.mxu0 0
  %197 = vmatpush1.bf16.msra.mxu0 0
  %198 = vmatprep.mubr.bf16.mxu0 0
  %199 = vmatmul.mubr.bf16.gmra.mrb[0].mxu0 %v102
  %v200 = vpop.f32.mrb[0].mxu0
  %v201 = vadd.f32 0.0, %v200
  %v202 = vpop.f32.mrb[0].mxu0
  %v203 = vpop.f32.mrb[0].mxu0
  %v204 = vadd.f32 0.0, %v203
  %v205 = vpop.f32.mrb[0].mxu0
  %206 = vmatprep.mubr.bf16.mxu0 0
  %207 = vmatmul.mubr.bf16.gmra.mrb[0].mxu0 %v103
  %v208 = vpop.f32.mrb[0].mxu0
  %v209 = vadd.f32 0.0, %v208
  %v210 = vpop.f32.mrb[0].mxu0
  %v211 = vpop.f32.mrb[0].mxu0
  %v212 = vadd.f32 0.0, %v211
  %v213 = vpop.f32.mrb[0].mxu0
  %214 = vmatprep.mubr.bf16.mxu0 0
  %215 = vmatmul.mubr.bf16.gmra.mrb[0].mxu0 %v104
  %v216 = vpop.f32.mrb[0].mxu0
  %v217 = vadd.f32 0.0, %v216
  %v218 = vpop.f32.mrb[0].mxu0
  %v219 = vpop.f32.mrb[0].mxu0
  %v220 = vadd.f32 0.0, %v219
  %v221 = vpop.f32.mrb[0].mxu0
  %222 = vmatprep.mubr.bf16.mxu0 0
  %223 = vmatmul.mubr.bf16.gmra.mrb[0].mxu0 %v105
  %v224 = vpop.f32.mrb[0].mxu0
  %v225 = vadd.f32 0.0, %v224
  %v226 = vpop.f32.mrb[0].mxu0
  %v227 = vpop.f32.mrb[0].mxu0
  %v228 = vadd.f32 0.0, %v227
  %v229 = vpop.f32.mrb[0].mxu0
  %230 = vmatprep.mubr.bf16.mxu0 0
  %231 = vmatmul.mubr.bf16.gmra.mrb[0].mxu0 %v106
  %v232 = vpop.f32.mrb[0].mxu0
  %v233 = vadd.f32 0.0, %v232
  %v234 = vpop.f32.mrb[0].mxu0
  %v235 = vpop.f32.mrb[0].mxu0
  %v236 = vadd.f32 0.0, %v235
  %v237 = vpop.f32.mrb[0].mxu0
  %238 = vmatprep.mubr.bf16.mxu0 0
  %239 = vmatmul.mubr.bf16.gmra.mrb[0].mxu0 %v107
  %v240 = vpop.f32.mrb[0].mxu0
  %v241 = vadd.f32 0.0, %v240
  %v242 = vpop.f32.mrb[0].mxu0
  %v243 = vpop.f32.mrb[0].mxu0
  %v244 = vadd.f32 0.0, %v243
  %v245 = vpop.f32.mrb[0].mxu0
  %246 = vmatprep.mubr.bf16.mxu0 0
  %247 = vmatmul.mubr.bf16.gmra.mrb[0].mxu0 %v108
  %v248 = vpop.f32.mrb[0].mxu0
  %v249 = vadd.f32 0.0, %v248
  %v250 = vpop.f32.mrb[0].mxu0
  %v251 = vpop.f32.mrb[0].mxu0
  %v252 = vadd.f32 0.0, %v251
  %v253 = vpop.f32.mrb[0].mxu0
  %254 = vmatprep.mubr.bf16.mxu0 0
  %255 = vmatmul.mubr.bf16.gmra.mrb[0].mxu0 %v109
  %v256 = vpop.f32.mrb[0].mxu0
  %v257 = vadd.f32 0.0, %v256
  %v258 = vpop.f32.mrb[0].mxu0
  %v259 = vpop.f32.mrb[0].mxu0
  %v260 = vadd.f32 0.0, %v259
  %v261 = vpop.f32.mrb[0].mxu0
  %262 = vdwg.mxu0
  %v263 = vld [vmem:[#allocation2] sm:$0xff]
  %v264 = vld [vmem:[#allocation2 + $0x8] sm:$0xff]
  %v265 = vld [vmem:[#allocation2 + $0x10] sm:$0xff]
  %v266 = vld [vmem:[#allocation2 + $0x18] sm:$0xff]
  %v267 = vld [vmem:[#allocation2 + $0x20] sm:$0xff]
  %v268 = vld [vmem:[#allocation2 + $0x28] sm:$0xff]
  %v269 = vld [vmem:[#allocation2 + $0x30] sm:$0xff]
  %v270 = vld [vmem:[#allocation2 + $0x38] sm:$0xff]
  %v271 = vld [vmem:[#allocation2 + $0x40] sm:$0xff]
  %v272 = vld [vmem:[#allocation2 + $0x48] sm:$0xff]
  %v273 = vld [vmem:[#allocation2 + $0x50] sm:$0xff]
  %v274 = vld [vmem:[#allocation2 + $0x58] sm:$0xff]
  %v275 = vld [vmem:[#allocation2 + $0x60] sm:$0xff]
  %v276 = vld [vmem:[#allocation2 + $0x68] sm:$0xff]
  %v277 = vld [vmem:[#allocation2 + $0x70] sm:$0xff]
  %v278 = vld [vmem:[#allocation2 + $0x78] sm:$0xff]
  %v279 = vld [vmem:[%s0] sm:$0xf]
  %v280 = vld [vmem:[%s0 + $0x4] sm:$0xf]
  %v281 = vld [vmem:[%s0 + $0x8] sm:$0xf]
  %v282 = vld [vmem:[%s0 + $0xc] sm:$0xf]
  %v283 = vld [vmem:[%s0 + $0x10] sm:$0xf]
  %v284 = vld [vmem:[%s0 + $0x14] sm:$0xf]
  %v285 = vld [vmem:[%s0 + $0x18] sm:$0xf]
  %v286 = vld [vmem:[%s0 + $0x1c] sm:$0xf]
  %v287 = vld [vmem:[%s0 + $0x20] sm:$0xf]
  %v288 = vld [vmem:[%s0 + $0x24] sm:$0xf]
  %v289 = vld [vmem:[%s0 + $0x28] sm:$0xf]
  %v290 = vld [vmem:[%s0 + $0x2c] sm:$0xf]
  %v291 = vld [vmem:[%s0 + $0x30] sm:$0xf]
  %v292 = vld [vmem:[%s0 + $0x34] sm:$0xf]
  %v293 = vld [vmem:[%s0 + $0x38] sm:$0xf]
  %v294 = vld [vmem:[%s0 + $0x3c] sm:$0xf]
  %v295 = vpack.c.bf16 %v204, %v201
  %v296 = vpack.c.bf16 %v212, %v209
  %v297 = vpack.c.bf16 %v220, %v217
  %v298 = vpack.c.bf16 %v228, %v225
  %v299 = vpack.c.bf16 %v236, %v233
  %v300 = vpack.c.bf16 %v244, %v241
  %v301 = vpack.c.bf16 %v252, %v249
  %v302 = vpack.c.bf16 %v260, %v257
  %v319 = vunpack.c.l.b16 %v279
  %v320 = vunpack.c.l.b16 %v280
  %v321 = vunpack.c.l.b16 %v281
  %v322 = vunpack.c.l.b16 %v282
  %v323 = vunpack.c.l.b16 %v283
  %v324 = vunpack.c.l.b16 %v284
  %v325 = vunpack.c.l.b16 %v285
  %v326 = vunpack.c.l.b16 %v286
  %v327 = vunpack.c.l.b16 %v287
  %v328 = vunpack.c.l.b16 %v288
  %v329 = vunpack.c.l.b16 %v289
  %v330 = vunpack.c.l.b16 %v290
  %v331 = vunpack.c.l.b16 %v291
  %v332 = vunpack.c.l.b16 %v292
  %v333 = vunpack.c.l.b16 %v293
  %v334 = vunpack.c.l.b16 %v294
  %v335 = vpack.c.b16 %v320, %v319
  %v336 = vpack.c.b16 %v322, %v321
  %v337 = vpack.c.b16 %v324, %v323
  %v338 = vpack.c.b16 %v326, %v325
  %v339 = vpack.c.b16 %v328, %v327
  %v340 = vpack.c.b16 %v330, %v329
  %v341 = vpack.c.b16 %v332, %v331
  %v342 = vpack.c.b16 %v334, %v333
  %351 = vmatprep.subr.bf16.mxu0 0
  %352 = vmatpush1.bf16.msra.mxu0 %v295
  %353 = vmatprep.subr.bf16.mxu0 0
  %354 = vmatpush1.bf16.msra.mxu0 %v296
  %355 = vmatprep.subr.bf16.mxu0 0
  %356 = vmatpush1.bf16.msra.mxu0 %v297
  %357 = vmatprep.subr.bf16.mxu0 0
  %358 = vmatpush1.bf16.msra.mxu0 %v298
  %359 = vmatprep.subr.bf16.mxu0 0
  %360 = vmatpush1.bf16.msra.mxu0 %v299
  %361 = vmatprep.subr.bf16.mxu0 0
  %362 = vmatpush1.bf16.msra.mxu0 %v300
  %363 = vmatprep.subr.bf16.mxu0 0
  %364 = vmatpush1.bf16.msra.mxu0 %v301
  %365 = vmatprep.subr.bf16.mxu0 0
  %366 = vmatpush1.bf16.msra.mxu0 %v302
  %367 = vmatprep.subr.bf16.mxu0 0
  %368 = vmatpush1.bf16.msra.mxu0 0
  %369 = vmatprep.subr.bf16.mxu0 0
  %370 = vmatpush1.bf16.msra.mxu0 0
  %371 = vmatprep.subr.bf16.mxu0 0
  %372 = vmatpush1.bf16.msra.mxu0 0
  %373 = vmatprep.subr.bf16.mxu0 0
  %374 = vmatpush1.bf16.msra.mxu0 0
  %375 = vmatprep.subr.bf16.mxu0 0
  %376 = vmatpush1.bf16.msra.mxu0 0
  %377 = vmatprep.subr.bf16.mxu0 0
  %378 = vmatpush1.bf16.msra.mxu0 0
  %379 = vmatprep.subr.bf16.mxu0 0
  %380 = vmatpush1.bf16.msra.mxu0 0
  %381 = vmatprep.subr.bf16.mxu0 0
  %382 = vmatpush1.bf16.msra.mxu0 0
  %383 = vmatprep.mubr.bf16.mxu0 0
  %384 = vmatmul.mubr.bf16.gmra.mrb[0].mxu0 %v335
  %v385 = vpop.f32.mrb[0].mxu0
  %v386 = vadd.f32 0.0, %v385
  %v387 = vpop.f32.mrb[0].mxu0
  %v388 = vpop.f32.mrb[0].mxu0
  %v389 = vadd.f32 0.0, %v388
  %v390 = vpop.f32.mrb[0].mxu0
  %391 = vmatprep.mubr.bf16.mxu0 0
  %392 = vmatmul.mubr.bf16.gmra.mrb[0].mxu0 %v336
  %v393 = vpop.f32.mrb[0].mxu0
  %v394 = vadd.f32 0.0, %v393
  %v395 = vpop.f32.mrb[0].mxu0
  %v396 = vpop.f32.mrb[0].mxu0
  %v397 = vadd.f32 0.0, %v396
  %v398 = vpop.f32.mrb[0].mxu0
  %399 = vmatprep.mubr.bf16.mxu0 0
  %400 = vmatmul.mubr.bf16.gmra.mrb[0].mxu0 %v337
  %v401 = vpop.f32.mrb[0].mxu0
  %v402 = vadd.f32 0.0, %v401
  %v403 = vpop.f32.mrb[0].mxu0
  %v404 = vpop.f32.mrb[0].mxu0
  %v405 = vadd.f32 0.0, %v404
  %v406 = vpop.f32.mrb[0].mxu0
  %407 = vmatprep.mubr.bf16.mxu0 0
  %408 = vmatmul.mubr.bf16.gmra.mrb[0].mxu0 %v338
  %v409 = vpop.f32.mrb[0].mxu0
  %v410 = vadd.f32 0.0, %v409
  %v411 = vpop.f32.mrb[0].mxu0
  %v412 = vpop.f32.mrb[0].mxu0
  %v413 = vadd.f32 0.0, %v412
  %v414 = vpop.f32.mrb[0].mxu0
  %415 = vmatprep.mubr.bf16.mxu0 0
  %416 = vmatmul.mubr.bf16.gmra.mrb[0].mxu0 %v339
  %v417 = vpop.f32.mrb[0].mxu0
  %v418 = vadd.f32 0.0, %v417
  %v419 = vpop.f32.mrb[0].mxu0
  %v420 = vpop.f32.mrb[0].mxu0
  %v421 = vadd.f32 0.0, %v420
  %v422 = vpop.f32.mrb[0].mxu0
  %423 = vmatprep.mubr.bf16.mxu0 0
  %424 = vmatmul.mubr.bf16.gmra.mrb[0].mxu0 %v340
  %v425 = vpop.f32.mrb[0].mxu0
  %v426 = vadd.f32 0.0, %v425
  %v427 = vpop.f32.mrb[0].mxu0
  %v428 = vpop.f32.mrb[0].mxu0
  %v429 = vadd.f32 0.0, %v428
  %v430 = vpop.f32.mrb[0].mxu0
  %431 = vmatprep.mubr.bf16.mxu0 0
  %432 = vmatmul.mubr.bf16.gmra.mrb[0].mxu0 %v341
  %v433 = vpop.f32.mrb[0].mxu0
  %v434 = vadd.f32 0.0, %v433
  %v435 = vpop.f32.mrb[0].mxu0
  %v436 = vpop.f32.mrb[0].mxu0
  %v437 = vadd.f32 0.0, %v436
  %v438 = vpop.f32.mrb[0].mxu0
  %439 = vmatprep.mubr.bf16.mxu0 0
  %440 = vmatmul.mubr.bf16.gmra.mrb[0].mxu0 %v342
  %v441 = vpop.f32.mrb[0].mxu0
  %v442 = vadd.f32 0.0, %v441
  %v443 = vpop.f32.mrb[0].mxu0
  %v444 = vpop.f32.mrb[0].mxu0
  %v445 = vadd.f32 0.0, %v444
  %v446 = vpop.f32.mrb[0].mxu0
  %447 = vdwg.mxu0
  %v448 = vadd.f32 %v263, %v386
  %v449 = vadd.f32 %v264, %v389
  %v450 = vadd.f32 %v265, %v394
  %v451 = vadd.f32 %v266, %v397
  %v452 = vadd.f32 %v267, %v402
  %v453 = vadd.f32 %v268, %v405
  %v454 = vadd.f32 %v269, %v410
  %v455 = vadd.f32 %v270, %v413
  %v456 = vadd.f32 %v271, %v418
  %v457 = vadd.f32 %v272, %v421
  %v458 = vadd.f32 %v273, %v426
  %v459 = vadd.f32 %v274, %v429
  %v460 = vadd.f32 %v275, %v434
  %v461 = vadd.f32 %v276, %v437
  %v462 = vadd.f32 %v277, %v442
  %v463 = vadd.f32 %v278, %v445
  %464 = vst [vmem:[#allocation2] sm:$0xff] %v448
  %465 = vst [vmem:[#allocation2 + $0x8] sm:$0xff] %v449
  %466 = vst [vmem:[#allocation2 + $0x10] sm:$0xff] %v450
  %467 = vst [vmem:[#allocation2 + $0x18] sm:$0xff] %v451
  %468 = vst [vmem:[#allocation2 + $0x20] sm:$0xff] %v452
  %469 = vst [vmem:[#allocation2 + $0x28] sm:$0xff] %v453
  %470 = vst [vmem:[#allocation2 + $0x30] sm:$0xff] %v454
  %471 = vst [vmem:[#allocation2 + $0x38] sm:$0xff] %v455
  %472 = vst [vmem:[#allocation2 + $0x40] sm:$0xff] %v456
  %473 = vst [vmem:[#allocation2 + $0x48] sm:$0xff] %v457
  %474 = vst [vmem:[#allocation2 + $0x50] sm:$0xff] %v458
  %475 = vst [vmem:[#allocation2 + $0x58] sm:$0xff] %v459
  %476 = vst [vmem:[#allocation2 + $0x60] sm:$0xff] %v460
  %477 = vst [vmem:[#allocation2 + $0x68] sm:$0xff] %v461
  %478 = vst [vmem:[#allocation2 + $0x70] sm:$0xff] %v462
  %479 = vst [vmem:[#allocation2 + $0x78] sm:$0xff] %v463
  // Predicated region
  $region22: #{gcn_encoder_forward.2} parent=0 // pred_check
    %p480 = pneg %p18
  $region23: #{gcn_encoder_forward.2} parent=0 // pred_check_branch
    %482 = sbr.rel (%p480) target = $region25
  $region24: #{gcn_encoder_forward.2} parent=0 // pred_region
    %v483 = vld [vmem:[#allocation2] sm:$0xff]
    %v484 = vld [vmem:[#allocation2 + $0x8] sm:$0xff]
    %v485 = vld [vmem:[#allocation2 + $0x10] sm:$0xff]
    %v486 = vld [vmem:[#allocation2 + $0x18] sm:$0xff]
    %v487 = vld [vmem:[#allocation2 + $0x20] sm:$0xff]
    %v488 = vld [vmem:[#allocation2 + $0x28] sm:$0xff]
    %v489 = vld [vmem:[#allocation2 + $0x30] sm:$0xff]
    %v490 = vld [vmem:[#allocation2 + $0x38] sm:$0xff]
    %v491 = vld [vmem:[#allocation2 + $0x40] sm:$0xff]
    %v492 = vld [vmem:[#allocation2 + $0x48] sm:$0xff]
    %v493 = vld [vmem:[#allocation2 + $0x50] sm:$0xff]
    %v494 = vld [vmem:[#allocation2 + $0x58] sm:$0xff]
    %v495 = vld [vmem:[#allocation2 + $0x60] sm:$0xff]
    %v496 = vld [vmem:[#allocation2 + $0x68] sm:$0xff]
    %v497 = vld [vmem:[#allocation2 + $0x70] sm:$0xff]
    %v498 = vld [vmem:[#allocation2 + $0x78] sm:$0xff]
    %v499 = vld [vmem:[%s3] sm:$0x1]
    %v501 = vlaneseq
    %v502 = vshrl.u32 %v501, 7
    %v503 = vsub.s32 0, %v502
    %v504 = vrot.slane %v499, %v503
    %v506 = vadd.f32 %v483, %v504
    %v507 = vadd.f32 %v484, %v504
    %v508 = vadd.f32 %v485, %v504
    %v509 = vadd.f32 %v486, %v504
    %v510 = vadd.f32 %v487, %v504
    %v511 = vadd.f32 %v488, %v504
    %v512 = vadd.f32 %v489, %v504
    %v513 = vadd.f32 %v490, %v504
    %v514 = vadd.f32 %v491, %v504
    %v515 = vadd.f32 %v492, %v504
    %v516 = vadd.f32 %v493, %v504
    %v517 = vadd.f32 %v494, %v504
    %v518 = vadd.f32 %v495, %v504
    %v519 = vadd.f32 %v496, %v504
    %v520 = vadd.f32 %v497, %v504
    %v521 = vadd.f32 %v498, %v504
    %v522 = vmax.f32 %v506, 0.0
    %v523 = vmax.f32 %v507, 0.0
    %v524 = vmax.f32 %v508, 0.0
    %v525 = vmax.f32 %v509, 0.0
    %v526 = vmax.f32 %v510, 0.0
    %v527 = vmax.f32 %v511, 0.0
    %v528 = vmax.f32 %v512, 0.0
    %v529 = vmax.f32 %v513, 0.0
    %v530 = vmax.f32 %v514, 0.0
    %v531 = vmax.f32 %v515, 0.0
    %v532 = vmax.f32 %v516, 0.0
    %v533 = vmax.f32 %v517, 0.0
    %v534 = vmax.f32 %v518, 0.0
    %v535 = vmax.f32 %v519, 0.0
    %v536 = vmax.f32 %v520, 0.0
    %v537 = vmax.f32 %v521, 0.0
    %v538 = vpack.c.bf16 %v523, %v522
    %v539 = vpack.c.bf16 %v525, %v524
    %v540 = vpack.c.bf16 %v527, %v526
    %v541 = vpack.c.bf16 %v529, %v528
    %v542 = vpack.c.bf16 %v531, %v530
    %v543 = vpack.c.bf16 %v533, %v532
    %v544 = vpack.c.bf16 %v535, %v534
    %v545 = vpack.c.bf16 %v537, %v536
    %v554 = vunpack.c.l.b16 %v538
    %v555 = vunpack.c.h.b16 %v538
    %v556 = vunpack.c.l.b16 %v539
    %v557 = vunpack.c.h.b16 %v539
    %v558 = vunpack.c.l.b16 %v540
    %v559 = vunpack.c.h.b16 %v540
    %v560 = vunpack.c.l.b16 %v541
    %v561 = vunpack.c.h.b16 %v541
    %v562 = vunpack.c.l.b16 %v542
    %v563 = vunpack.c.h.b16 %v542
    %v564 = vunpack.c.l.b16 %v543
    %v565 = vunpack.c.h.b16 %v543
    %v566 = vunpack.c.l.b16 %v544
    %v567 = vunpack.c.h.b16 %v544
    %v568 = vunpack.c.l.b16 %v545
    %v569 = vunpack.c.h.b16 %v545
    %v570 = vpack.c.b16 %v554, %v554
    %v571 = vpack.c.b16 %v555, %v555
    %v572 = vpack.c.b16 %v556, %v556
    %v573 = vpack.c.b16 %v557, %v557
    %v574 = vpack.c.b16 %v558, %v558
    %v575 = vpack.c.b16 %v559, %v559
    %v576 = vpack.c.b16 %v560, %v560
    %v577 = vpack.c.b16 %v561, %v561
    %v578 = vpack.c.b16 %v562, %v562
    %v579 = vpack.c.b16 %v563, %v563
    %v580 = vpack.c.b16 %v564, %v564
    %v581 = vpack.c.b16 %v565, %v565
    %v582 = vpack.c.b16 %v566, %v566
    %v583 = vpack.c.b16 %v567, %v567
    %v584 = vpack.c.b16 %v568, %v568
    %v585 = vpack.c.b16 %v569, %v569
    %602 = vst [vmem:[%s4] sm:$0xf] %v570
    %603 = vst [vmem:[%s4 + $0x4] sm:$0xf] %v571
    %604 = vst [vmem:[%s4 + $0x8] sm:$0xf] %v572
    %605 = vst [vmem:[%s4 + $0xc] sm:$0xf] %v573
    %606 = vst [vmem:[%s4 + $0x10] sm:$0xf] %v574
    %607 = vst [vmem:[%s4 + $0x14] sm:$0xf] %v575
    %608 = vst [vmem:[%s4 + $0x18] sm:$0xf] %v576
    %609 = vst [vmem:[%s4 + $0x1c] sm:$0xf] %v577
    %610 = vst [vmem:[%s4 + $0x20] sm:$0xf] %v578
    %611 = vst [vmem:[%s4 + $0x24] sm:$0xf] %v579
    %612 = vst [vmem:[%s4 + $0x28] sm:$0xf] %v580
    %613 = vst [vmem:[%s4 + $0x2c] sm:$0xf] %v581
    %614 = vst [vmem:[%s4 + $0x30] sm:$0xf] %v582
    %615 = vst [vmem:[%s4 + $0x34] sm:$0xf] %v583
    %616 = vst [vmem:[%s4 + $0x38] sm:$0xf] %v584
    %617 = vst [vmem:[%s4 + $0x3c] sm:$0xf] %v585
  $region25: #{gcn_encoder_forward.2} parent=0 // pred_fallthru
    _
  // Predicated region
  $region26: #{gcn_encoder_forward.2} parent=0 // pred_check
    _
  $region27: #{gcn_encoder_forward.2} parent=0 // pred_check_branch
    %619 = sbr.rel (0) target = $region29
  $region28: #{gcn_encoder_forward.2} parent=0 // pred_region
    _
  $region29: #{gcn_encoder_forward.2} parent=0 // pred_fallthru
    _
  // Predicated region
  $region30: #{gcn_encoder_forward.2} parent=0 // pred_check
    _
  $region31: #{gcn_encoder_forward.2} parent=0 // pred_check_branch
    %621 = sbr.rel (0) target = $region33
  $region32: #{gcn_encoder_forward.2} parent=0 // pred_region
    _
  $region33: #{gcn_encoder_forward.2} parent=0 // pred_fallthru
    _

</llo_original>
